<compile_context>
chip_gen: v5e
topology: v5e:2x2
jax: 0.10.0
libtpu: 0.0.40
codegen_flags: <defaults>
</compile_context>

<pallas_src>
import jax
import jax.numpy as jnp
from jax import lax
from jax.experimental import pallas as pl
from jax.experimental.pallas import tpu as pltpu


_LANES = 128
_PACK = _LANES // 4          # 32 batch rows packed into one 128-lane row
_SUBLANES = 8
_MAX_ROWS_PER_STEP = 8192    # 8192x128 f32 = 4 MiB per block buffer
_MIN_ROWS_PER_STEP = 1024    # don't split the grid below ~512 KiB/step
_TARGET_STEPS = 4            # give the pipeline depth / both v7x TCs work


def _round_up(a: int, b: int) -> int:
    return ((a + b - 1) // b) * b


def make_cartesian_arm_two_link(mass_link_1: float, mass_link_2: float):
    """Returns a callable (x, u) -> xdot implementing the forward pass."""
    m1 = float(mass_link_1)
    m2 = float(mass_link_2)
    inv1 = 1.0 / (m1 + m2)
    inv2 = 1.0 / m2

    def kernel(in_ref, o_ref):
        # in_ref/o_ref: (tm, 128); each 128-lane row holds 32 packed batch
        # rows laid out as [dq1, dq2, tau1, tau2] * 32.
        v = in_ref[...]
        lane = lax.broadcasted_iota(jnp.int32, v.shape, dimension=1) % 4
        # lane%4: 0 -> dq1 (x1), 1 -> dq2 (x1), 2 -> tau1 (x inv1), 3 -> tau2 (x inv2)
        scale = jnp.where(lane == 2, inv1, jnp.where(lane == 3, inv2, 1.0))
        o_ref[...] = (v.astype(jnp.float32) * scale).astype(o_ref.dtype)

    @jax.jit
    def forward(x: jax.Array, u: jax.Array) -> jax.Array:
        assert x.shape[1] == 4, "Invalid state dimension."
        assert u.shape[1] == 2, "Invalid control dimension."
        n = x.shape[0]
        u = u.astype(x.dtype)  # avoid silent dtype promotion vs. reference

        # One packed batch-major array: columns [dq1, dq2, tau1, tau2].
        packed = jnp.concatenate([x[:, 2:4], u], axis=1)  # (n, 4)

        # Number of 128-lane rows after packing (sublane aligned).
        m = _round_up(pl.cdiv(n, _PACK), _SUBLANES)

        # Adaptive grid: several steps for big batches, one step for small.
        if m >= _TARGET_STEPS * _MIN_ROWS_PER_STEP:
            steps = max(_TARGET_STEPS, pl.cdiv(m, _MAX_ROWS_PER_STEP))
        else:
            steps = 1
        tm = _round_up(pl.cdiv(m, steps), _SUBLANES)
        m_pad = tm * steps
        n_tot = m_pad * _PACK

        packed = jnp.pad(packed, ((0, n_tot - n), (0, 0)))
        packed = packed.reshape(m_pad, _LANES)  # fully dense (8,128) tiles

        out_packed = pl.pallas_call(
            kernel,
            out_shape=jax.ShapeDtypeStruct((m_pad, _LANES), x.dtype),
            grid=(steps,),
            in_specs=[pl.BlockSpec((tm, _LANES), lambda i: (i, 0))],
            out_specs=pl.BlockSpec((tm, _LANES), lambda i: (i, 0)),
            compiler_params=pltpu.CompilerParams(
                dimension_semantics=("parallel",),
                vmem_limit_bytes=32 * 1024 * 1024,
            ),
        )(packed)

        return out_packed.reshape(n_tot, 4)[:n]  # back to (n, 4)

    return forward


def reference_forward(x, u, m1, m2):
    dq = x[:, 2:4]
    ddq1 = u[:, 0:1] / (m1 + m2)
    ddq2 = u[:, 1:2] / m2
    return jnp.concatenate([dq, ddq1, ddq2], axis=1)


if __name__ == "__main__":
    # Deterministic "parameters" (the module's mass buffers).
    mass_link_1 = 1.5
    mass_link_2 = 0.75

    key = jax.random.PRNGKey(0)
    kx, ku = jax.random.split(key)
    batch = 8
    x = jax.random.normal(kx, (batch, 4), dtype=jnp.float32)
    u = jax.random.normal(ku, (batch, 2), dtype=jnp.float32)

    forward = make_cartesian_arm_two_link(mass_link_1, mass_link_2)
    out = forward(x, u)
    jax.block_until_ready(out)

    ref = reference_forward(x, u, mass_link_1, mass_link_2)
    assert out.shape == (batch, 4)
    assert out.dtype == jnp.float32
    assert jnp.allclose(out, ref, atol=1e-6, rtol=1e-6)

    # Also exercise a larger, non-aligned batch (padded + packed path).
    batch2 = 1000
    kx2, ku2 = jax.random.split(ku)
    x2 = jax.random.normal(kx2, (batch2, 4), dtype=jnp.float32)
    u2 = jax.random.normal(ku2, (batch2, 2), dtype=jnp.float32)
    out2 = forward(x2, u2)
    jax.block_until_ready(out2)
    ref2 = reference_forward(x2, u2, mass_link_1, mass_link_2)
    assert out2.shape == (batch2, 4)
    assert jnp.allclose(out2, ref2, atol=1e-6, rtol=1e-6)

    print("KERNEL_OK")
</pallas_src>

<mosaic_0001>
module attributes {stable_mosaic.version = 11 : i64} {
  func.func @kernel(%arg0: i32, %arg1: memref<8x128xf32, #tpu.memory_space<vmem>>, %arg2: memref<8x128xf32, #tpu.memory_space<vmem>>) attributes {dimension_semantics = [#tpu.dimension_semantics<parallel>], iteration_bounds = array<i64: 1>, scalar_prefetch = 0 : i64, scratch_operands = 0 : i64, tpu.core_type = #tpu.core_type<tc>, window_params = [{transform_indices = @transform_0, window_bounds = array<i64: 8, 128>}, {transform_indices = @transform_1, window_bounds = array<i64: 8, 128>}]} {
    %c0 = arith.constant 0 : index
    %c0_0 = arith.constant 0 : index
    %0 = vector.load %arg1[%c0, %c0_0] : memref<8x128xf32, #tpu.memory_space<vmem>>, vector<8x128xf32>
    %1 = tpu.iota {dimensions = array<i32: 1>} : vector<8x128xi32>
    %c4_i32 = arith.constant 4 : i32
    %c0_i32 = arith.constant 0 : i32
    %2 = arith.cmpi eq, %c4_i32, %c0_i32 : i32
    %c1_i32 = arith.constant 1 : i32
    %3 = arith.select %2, %c1_i32, %c4_i32 : i32
    %4 = vector.broadcast %3 : i32 to vector<8x128xi32>
    %5 = arith.remsi %1, %4 : vector<8x128xi32>
    %c0_i32_1 = arith.constant 0 : i32
    %6 = vector.broadcast %c0_i32_1 : i32 to vector<8x128xi32>
    %7 = arith.cmpi ne, %5, %6 : vector<8x128xi32>
    %c0_i32_2 = arith.constant 0 : i32
    %8 = vector.broadcast %c0_i32_2 : i32 to vector<8x128xi32>
    %9 = arith.cmpi slt, %5, %8 : vector<8x128xi32>
    %c0_i32_3 = arith.constant 0 : i32
    %10 = arith.cmpi slt, %3, %c0_i32_3 : i32
    %11 = vector.broadcast %10 : i1 to vector<8x128xi1>
    %12 = vector.broadcast %11 : vector<8x128xi1> to vector<8x128xi1>
    %13 = arith.xori %9, %12 : vector<8x128xi1>
    %14 = arith.andi %13, %7 : vector<8x128xi1>
    %15 = vector.broadcast %3 : i32 to vector<8x128xi32>
    %16 = arith.addi %5, %15 : vector<8x128xi32>
    %17 = arith.select %14, %16, %5 : vector<8x128xi1>, vector<8x128xi32>
    %c2_i32 = arith.constant 2 : i32
    %18 = vector.broadcast %c2_i32 : i32 to vector<8x128xi32>
    %19 = arith.cmpi eq, %17, %18 : vector<8x128xi32>
    %c3_i32 = arith.constant 3 : i32
    %20 = vector.broadcast %c3_i32 : i32 to vector<8x128xi32>
    %21 = arith.cmpi eq, %17, %20 : vector<8x128xi32>
    %cst = arith.constant 1.33333337 : f32
    %cst_4 = arith.constant 1.000000e+00 : f32
    %22 = vector.broadcast %cst : f32 to vector<8x128xf32>
    %23 = vector.broadcast %cst_4 : f32 to vector<8x128xf32>
    %24 = arith.select %21, %22, %23 : vector<8x128xi1>, vector<8x128xf32>
    %cst_5 = arith.constant 0.444444448 : f32
    %25 = vector.broadcast %cst_5 : f32 to vector<8x128xf32>
    %26 = arith.select %19, %25, %24 : vector<8x128xi1>, vector<8x128xf32>
    %27 = arith.mulf %0, %26 : vector<8x128xf32>
    %c0_6 = arith.constant 0 : index
    %c0_7 = arith.constant 0 : index
    %28 = vector.load %arg2[%c0_6, %c0_7] : memref<8x128xf32, #tpu.memory_space<vmem>>, vector<8x128xf32>
    tpu.vector_store %arg2[%c0_6, %c0_7], %27 {strides = array<i32>} : memref<8x128xf32, #tpu.memory_space<vmem>>, vector<8x128xf32>,
    return
  }
  func.func @transform_0(%arg0: i32) -> (i32, i32) {
    %c0_i32 = arith.constant 0 : i32
    %c0_i32_0 = arith.constant 0 : i32
    return %arg0, %c0_i32 : i32, i32
  }
  func.func @transform_1(%arg0: i32) -> (i32, i32) {
    %c0_i32 = arith.constant 0 : i32
    %c0_i32_0 = arith.constant 0 : i32
    return %arg0, %c0_i32 : i32, i32
  }
}

</mosaic_0001>

<llo_original>
// kernel: forward.1
$region0: #{forward.1}
  #allocation0 [shape = 'u32[]', space=smem, size = 0x4, offset = 0x4, fixed_abs, tag = 'smem constant byte address 0x4 - core index']
  #allocation1 [shape = 'u32[72,128]{1,0:T(1,128)}', space=vmem, size = 0x9000, scoped, tag = 'internal scratch']
  %s0 = inlined_call_operand.vmem [shape: f32[8,128], index: 0, kind: input, shape index: {}]
  %s1 = inlined_call_operand.vmem [shape: f32[8,128], index: 1, kind: output, shape index: {}]
  %s2 = sld [smem:[#allocation0]]
  $region14: #{forward.1} parent=0
    _
  %s4 = ssub.s32 1, %s2
  %s5 = scalar_select 0, %s4, %s2
  // Predicated region
  $region2: #{forward.1} parent=0 // pred_check
    _
  $region3: #{forward.1} parent=0 // pred_check_branch
    %7 = sbr.rel (0) target = $region5
  $region4: #{forward.1} parent=0 // pred_region
    _
  $region5: #{forward.1} parent=0 // pred_fallthru
    _
  %v8 = vld [vmem:[%s0] sm:$0xff]
  %v9 = vlaneseq
  %v10 = vand.u32 %v9, 127
  %vm11 = vcmp.lt.s32.totalorder %v10, 0
  %v12 = vsub.s32 0, %v10
  %v13 = vsel %vm11, %v12, %v10
  %v14 = vshrl.u32 %v13, 2
  %v15 = vand.u32 %v13, 3
  %v16 = vsub.s32 0, %v15
  %v17 = vsel %vm11, %v16, %v15
  %vm18 = vcmp.ne.s32.totalorder %v17, 0
  %vm19 = vcmp.lt.s32.totalorder %v17, 0
  %vm20 = vmand %vm19, %vm18
  %v21 = vadd.s32 %v17, 4
  %v22 = vsel %vm20, %v21, %v17
  %vm23 = vcmp.eq.s32.totalorder %v22, 2
  %vm24 = vcmp.eq.s32.totalorder %v22, 3
  %v25 = vsel %vm24, 1.3333334, 1.0
  %v26 = vsel %vm23, 0.44444445, %v25
  %v27 = vmul.f32 %v8, %v26
  %28 = vst [vmem:[%s1] sm:$0xff] %v27
  // Predicated region
  $region6: #{forward.1} parent=0 // pred_check
    _
  $region7: #{forward.1} parent=0 // pred_check_branch
    %30 = sbr.rel (0) target = $region9
  $region8: #{forward.1} parent=0 // pred_region
    _
  $region9: #{forward.1} parent=0 // pred_fallthru
    _
  // Predicated region
  $region10: #{forward.1} parent=0 // pred_check
    _
  $region11: #{forward.1} parent=0 // pred_check_branch
    %32 = sbr.rel (0) target = $region13
  $region12: #{forward.1} parent=0 // pred_region
    _
  $region13: #{forward.1} parent=0 // pred_fallthru
    _

</llo_original>
